<compile_context>
chip_gen: v6e
topology: v6e:2x2x1
jax: 0.10.0
libtpu: 0.0.40
codegen_flags: <defaults>
</compile_context>

<pallas_src>
import math

import jax
import jax.numpy as jnp
from jax.experimental import pallas as pl
from jax.experimental.pallas import tpu as pltpu


# ----------------------------------------------------------------------------
# Pallas kernel: straight copy of one tile of the selected slice
# ----------------------------------------------------------------------------
def _copy_kernel(x_ref, o_ref):
    # x_ref: (tb, th, W) tile of the selected slice (leading axis squeezed).
    # o_ref: matching output tile.
    o_ref[...] = x_ref[...]


def _select_leading_pallas(x, index):
    """Return x[index] (leading-axis select) via a Pallas slice-copy kernel."""
    lead = x.shape[0]
    assert 0 <= index < lead, (index, lead)
    rest = x.shape[1:]

    if len(rest) == 0:
        # Scalar select: nothing to tile; a plain slice is the right tool.
        return x[index]

    # Normalize the stack to (lead, B, H, W) WITHOUT touching the last two
    # dims, so the reshape is layout-preserving (no relayout of x[0]/x[1]).
    if len(rest) == 1:
        B, H, W = 1, 1, rest[0]
    elif len(rest) == 2:
        B, H, W = 1, rest[0], rest[1]
    else:
        B, H, W = math.prod(rest[:-2]), rest[-2], rest[-1]
    x4 = x.reshape(lead, B, H, W)

    dsize = jnp.dtype(x.dtype).itemsize
    row_bytes = W * dsize
    target_bytes = 1 << 20  # ~1 MiB per block; 4x that live with double-buffer

    # Tile H only when a full (1, H, W) slab would be too big for the budget.
    if H * row_bytes <= (2 << 20):
        th = H
    else:
        th = max(8, (target_bytes // row_bytes) // 8 * 8)  # 8-multiple sublane tile
        th = min(th, H)

    # Tile B up to ~target bytes per block, but keep at least 2 grid steps
    # when possible (v7x: 2 TensorCores per chip share the parallel axes).
    blk_bytes = max(th * row_bytes, 1)
    tb = max(1, target_bytes // blk_bytes)
    tb = min(tb, B)
    if th == H and B > 1:
        tb = min(tb, pl.cdiv(B, 2))

    grid = (pl.cdiv(B, tb), pl.cdiv(H, th))

    y = pl.pallas_call(
        _copy_kernel,
        out_shape=jax.ShapeDtypeStruct((B, H, W), x.dtype),
        grid_spec=pltpu.PrefetchScalarGridSpec(
            num_scalar_prefetch=0,
            grid=grid,
            in_specs=[
                # Leading axis squeezed and pinned to `index`: only the
                # selected slice is DMA'd; native (H, W) layout is untouched.
                pl.BlockSpec((pl.Squeezed(), tb, th, W),
                             lambda i, j: (index, i, j, 0)),
            ],
            out_specs=pl.BlockSpec((tb, th, W), lambda i, j: (i, j, 0)),
        ),
        compiler_params=pltpu.CompilerParams(
            dimension_semantics=("parallel", "parallel"),
        ),
    )(x4)
    return y.reshape(rest)


def skip_forward(x, d=None, *, index=1):
    """Pallas implementation of skip.forward: returns x[index] (default 1).

    `d` is unused in the PyTorch forward and kept only for API parity.
    Accepts either a Python list/tuple of arrays (container indexing — no
    device work at all) or a stacked array with a leading selection axis.
    """
    if isinstance(x, (list, tuple)):
        # Pure Python container indexing; nothing to compute on device.
        return x[index]
    return _select_leading_pallas(x, index)


if __name__ == "__main__":
    key = jax.random.PRNGKey(0)

    # The module is fed a stack/list of feature maps and forwards the second
    # one: x has a leading selection axis of size 2.
    x = jax.random.normal(key, (2, 4, 16, 16), dtype=jnp.float32)

    out = skip_forward(x)                       # == x[1]
    out = jax.block_until_ready(out)

    ref = x[1]
    assert out.shape == ref.shape == (4, 16, 16), out.shape
    assert out.dtype == ref.dtype, (out.dtype, ref.dtype)
    assert jnp.array_equal(out, ref), float(jnp.max(jnp.abs(out - ref)))

    # A non-128-multiple, rank-3 shape exercises the "full native minor dims"
    # path (no relayout, no (1, m) fallback).
    x2 = jax.random.normal(jax.random.PRNGKey(1), (3, 24, 40), dtype=jnp.bfloat16)
    out2 = jax.block_until_ready(skip_forward(x2))
    assert jnp.array_equal(out2, x2[1])

    # Also exercise the list-of-tensors calling convention used in the model.
    k0, k1 = jax.random.split(key)
    xs = [jax.random.normal(k0, (2, 4, 8, 8), dtype=jnp.float32),
          jax.random.normal(k1, (2, 4, 8, 8), dtype=jnp.float32)]
    out3 = skip_forward(xs)
    assert jnp.array_equal(out3, xs[1])

    print("KERNEL_OK")
</pallas_src>

<mosaic_0001>
module attributes {stable_mosaic.version = 11 : i64} {
  func.func @_copy_kernel(%arg0: i32, %arg1: i32, %arg2: memref<1x2x16x16xf32, #tpu.memory_space<vmem>>, %arg3: memref<2x16x16xf32, #tpu.memory_space<vmem>>) attributes {dimension_semantics = [#tpu.dimension_semantics<parallel>, #tpu.dimension_semantics<parallel>], iteration_bounds = array<i64: 2, 1>, scalar_prefetch = 0 : i64, scratch_operands = 0 : i64, tpu.core_type = #tpu.core_type<tc>, window_params = [{transform_indices = @transform_0, window_bounds = array<i64: 1, 2, 16, 16>}, {transform_indices = @transform_1, window_bounds = array<i64: 2, 16, 16>}]} {
    %c0 = arith.constant 0 : index
    %c0_0 = arith.constant 0 : index
    %c0_1 = arith.constant 0 : index
    %c0_2 = arith.constant 0 : index
    %0 = vector.load %arg2[%c0, %c0_0, %c0_1, %c0_2] : memref<1x2x16x16xf32, #tpu.memory_space<vmem>>, vector<1x2x16x16xf32>
    %1 = vector.shape_cast %0 : vector<1x2x16x16xf32> to vector<2x16x16xf32>
    %c0_3 = arith.constant 0 : index
    %c0_4 = arith.constant 0 : index
    %c0_5 = arith.constant 0 : index
    %2 = vector.load %arg3[%c0_3, %c0_4, %c0_5] : memref<2x16x16xf32, #tpu.memory_space<vmem>>, vector<2x16x16xf32>
    tpu.vector_store %arg3[%c0_3, %c0_4, %c0_5], %1 {strides = array<i32>} : memref<2x16x16xf32, #tpu.memory_space<vmem>>, vector<2x16x16xf32>,
    return
  }
  func.func @transform_0(%arg0: i32, %arg1: i32) -> (i32, i32, i32, i32) {
    %c1_i32 = arith.constant 1 : i32
    %c0_i32 = arith.constant 0 : i32
    %c0_i32_0 = arith.constant 0 : i32
    return %c1_i32, %arg0, %arg1, %c0_i32 : i32, i32, i32, i32
  }
  func.func @transform_1(%arg0: i32, %arg1: i32) -> (i32, i32, i32) {
    %c0_i32 = arith.constant 0 : i32
    %c0_i32_0 = arith.constant 0 : i32
    return %arg0, %arg1, %c0_i32 : i32, i32, i32
  }
}

</mosaic_0001>

<llo_original>
// kernel: tpu_custom_call.1
$region0: #{tpu_custom_call.1}
  #allocation0 [shape = 'u32[]', space=smem, size = 0x4, offset = 0x4, fixed_abs, tag = 'smem constant byte address 0x4 - core index']
  #allocation1 [shape = 'u32[144,128]{1,0:T(1,128)}', space=vmem, size = 0x12000, scoped, tag = 'internal scratch']
  %s0 = inlined_call_operand.hbm [shape: f32[2,4,16,16], index: 0, kind: input, shape index: {}]
  %s1 = inlined_call_operand.hbm [shape: f32[4,16,16], index: 1, kind: output, shape index: {}]
  %s2 = sld [smem:[#allocation0]]
  $region41: #{tpu_custom_call.1} parent=0
    _
  %s4 = ssub.s32 1, %s2
  %s5 = scalar_select 0, %s4, %s2
  $region1: #{tpu_custom_call.1} parent=0
    #allocation2 [shape = 'u8[32768]{0}', space=vmem, size = 0x8000, scoped, tag = 'input window, operand 0']
    #allocation3 [shape = 's32[2]{0}', space=sflag, size = 0x8, scoped, tag = 'scoped memory for tpu_custom_call.1']
    #allocation4 [shape = 's32[2]{0}', space=sflag, size = 0x8, scoped, tag = 'scoped memory for tpu_custom_call.1']
    #allocation5 [shape = 'u8[32768]{0}', space=vmem, size = 0x8000, scoped, tag = 'output window, operand 0']
    %6 = vsyncpa [#allocation3], 0
    %s7 = scalar_lea.sflag [#allocation3], 1
    %8 = vsyncpa %s7, 0
    %9 = vsyncpa [#allocation4], 0
    %s10 = scalar_lea.sflag [#allocation4], 1
    %11 = vsyncpa %s10, 0
    loop: start=0, step=1, limit=4
    $region2: #{tpu_custom_call.1} parent=1 // loop_pre_header
      _
    $region3: #{tpu_custom_call.1} parent=1 // loop_header
      %s13 = sphi 0, %s17
      %p14 = scmp.ge.s32.totalorder %s13, 4
      %s20 = sphi 0, %s32
      %s21 = sphi 0, %s28
      %s22 = sphi 0, %s20
      %s23 = sphi 0, %s21
      %s24 = sphi 0, %s22
      %s25 = sphi 0, %s23
      %s37 = sphi 0, %s39
      %s40 = sphi 0, %s37
      %s41 = sphi 0, %s40
      %s57 = sphi 0, %s41
      %s65 = sphi 0, %s67
      %s68 = sphi 0, %s65
      %s69 = sphi 0, %s68
      %s85 = sphi 0, %s69
    $region4: #{tpu_custom_call.1} parent=1 // loop_header_branch
      %16 = sbr.rel (%p14) target = $region8
    $region5: #{tpu_custom_call.1} parent=1 // loop_body
      %s18 = ssub.s32 %s13, 1
      %s19 = ssub.s32 %s13, 2
      %s26 = sadd.s32 1, %s21
      %p27 = scmp.ge.s32.totalorder %s26, 1
      %s28 = scalar_select %p27, 0, %s26
      %s29 = sadd.s32 1, %s20
      %s30 = scalar_select %p27, %s29, %s20
      %p31 = scmp.ge.s32.totalorder %s30, 2
      %s32 = scalar_select %p31, 0, %s30
      %s33 = ssub.s32 %s20, %s32
      %s34 = ssub.s32 %s21, %s28
      %s35 = sor.u32 %s33, %s34
      %p36 = scmp.eq.s32.totalorder %s35, 0
      %s38 = sadd.s32 %s37, 1
      %s39 = scalar_select %p36, %s37, %s38
      %p42 = pneg %p36
      %p43 = scmp.eq.s32.totalorder %s13, 1
      %p44 = por %p42, %p43
      %p45 = scmp.ne.s32.totalorder %s37, %s40
      %p46 = scmp.eq.s32.totalorder %s13, 0
      %p47 = por %p45, %p46
      %p48 = scmp.ne.s32.totalorder %s37, %s40
      %p49 = scmp.eq.s32.totalorder %s18, 1
      %p50 = por %p48, %p49
      %p51 = scmp.ne.s32.totalorder %s40, %s41
      %p52 = scmp.eq.s32.totalorder %s18, 0
      %p53 = por %p51, %p52
      %p54 = scmp.ne.s32.totalorder %s40, %s41
      %p55 = scmp.eq.s32.totalorder %s19, 1
      %p56 = por %p54, %p55
      %p58 = scmp.ne.s32.totalorder %s41, %s57
      %p59 = scmp.eq.s32.totalorder %s19, 0
      %p60 = por %p58, %p59
      %s61 = ssub.s32 %s20, %s32
      %s62 = ssub.s32 %s21, %s28
      %s63 = sor.u32 %s61, %s62
      %p64 = scmp.eq.s32.totalorder %s63, 0
      %s66 = sadd.s32 %s65, 1
      %s67 = scalar_select %p64, %s65, %s66
      %p70 = pneg %p64
      %p71 = scmp.eq.s32.totalorder %s13, 1
      %p72 = por %p70, %p71
      %p73 = scmp.ne.s32.totalorder %s65, %s68
      %p74 = scmp.eq.s32.totalorder %s13, 0
      %p75 = por %p73, %p74
      %p76 = scmp.ne.s32.totalorder %s65, %s68
      %p77 = scmp.eq.s32.totalorder %s18, 1
      %p78 = por %p76, %p77
      %p79 = scmp.ne.s32.totalorder %s68, %s69
      %p80 = scmp.eq.s32.totalorder %s18, 0
      %p81 = por %p79, %p80
      %p82 = scmp.ne.s32.totalorder %s68, %s69
      %p83 = scmp.eq.s32.totalorder %s19, 1
      %p84 = por %p82, %p83
      %p86 = scmp.ne.s32.totalorder %s69, %s85
      %p87 = scmp.eq.s32.totalorder %s19, 0
      %p88 = por %p86, %p87
      %p89 = scmp.le.s32.totalorder 1, %s13
      %p90 = scmp.lt.s32.totalorder %s13, 3
      %p91 = pnand %p89, %p90
      %p92 = pneg %p91
      // Predicated region
      $region9: #{tpu_custom_call.1} parent=5 // pred_check
        _
      $region10: #{tpu_custom_call.1} parent=5 // pred_check_branch
        %94 = sbr.rel (%p91) target = $region12
      $region11: #{tpu_custom_call.1} parent=5 // pred_region
        %s95 = ssub.s32 %s13, 1
      $region12: #{tpu_custom_call.1} parent=5 // pred_fallthru
        _
      %p96 = scmp.lt.s32.totalorder %s13, 2
      // Predicated region
      $region13: #{tpu_custom_call.1} parent=5 // pred_check
        %p97 = pneg %p96
      $region14: #{tpu_custom_call.1} parent=5 // pred_check_branch
        %99 = sbr.rel (%p97) target = $region16
      $region15: #{tpu_custom_call.1} parent=5 // pred_region
        // Predicated region
        $region17: #{tpu_custom_call.1} parent=15 // pred_check
          %p100 = pneg %p47
        $region18: #{tpu_custom_call.1} parent=15 // pred_check_branch
          %102 = sbr.rel (%p100) target = $region20
        $region19: #{tpu_custom_call.1} parent=15 // pred_region
          %s103 = sand.u32 %s37, 1
          %s104 = scalar_lea.sflag [#allocation3], %s103
          %s105 = sand.u32 %s37, 1
          %s106 = smul.addr %s105, 32
          %s107 = scalar_lea.vmem [#allocation2], %s106
          %s108 = smul.u32 2, %s20
          %s109 = smul.u32 2, %s21
          %s111 = ssub.s32 512, 512
          %112 = vsyncadd %s104, %s111
          %s113 = smul.addr %s108, 2
          %s114 = sadd.s32 %s109, %s113
          %s115 = sadd.s32 %s114, 8
          %s116 = smul.addr %s115, 128
          %s117 = scalar_lea.hbm %s0, %s116
          %s118 = sshll.u32 %s107, 4
          %s119 = int_to_ptr.vmem [resolvable:$true] %s118
          %124 = dma.hbm_to_vmem [thread:$0]  %s117, 512, %s119, %s104, 128, 128, 8
        $region20: #{tpu_custom_call.1} parent=15 // pred_fallthru
          _
      $region16: #{tpu_custom_call.1} parent=5 // pred_fallthru
        _
      %p125 = scmp.le.s32.totalorder 1, %s13
      %p126 = scmp.lt.s32.totalorder %s13, 3
      %p127 = pnand %p125, %p126
      %p128 = pneg %p127
      // Predicated region
      $region21: #{tpu_custom_call.1} parent=5 // pred_check
        _
      $region22: #{tpu_custom_call.1} parent=5 // pred_check_branch
        %130 = sbr.rel (%p127) target = $region24
      $region23: #{tpu_custom_call.1} parent=5 // pred_region
        %s131 = ssub.s32 %s13, 1
        %s132 = sand.u32 %s40, 1
        %s133 = scalar_lea.sflag [#allocation3], %s132
        %s134 = sand.u32 %s40, 1
        %s135 = smul.addr %s134, 32
        %s136 = scalar_lea.vmem [#allocation2], %s135
        // Predicated region
        $region25: #{tpu_custom_call.1} parent=23 // pred_check
          %p137 = pneg %p53
        $region26: #{tpu_custom_call.1} parent=23 // pred_check_branch
          %139 = sbr.rel (%p137) target = $region28
        $region27: #{tpu_custom_call.1} parent=23 // pred_region
          %140 = dma.done %s133, 512
        $region28: #{tpu_custom_call.1} parent=23 // pred_fallthru
          _
        %s141 = sand.u32 %s40, 1
        %s142 = scalar_lea.sflag [#allocation3], %s141
        %s143 = sand.u32 %s40, 1
        %s144 = smul.addr %s143, 32
        %s145 = scalar_lea.vmem [#allocation2], %s144
        %p146 = pneg %p53
        %p147 = pneg %p50
        %p148 = pneg %p81
        %p149 = pneg %p78
        %s150 = sand.u32 %s68, 1
        %s151 = scalar_lea.sflag [#allocation4], %s150
        %s152 = sand.u32 %s68, 1
        %s153 = smul.addr %s152, 32
        %s154 = scalar_lea.vmem [#allocation5], %s153
        %s155 = smul.u32 2, %s22
        %s156 = smul.u32 2, %s23
        %s157 = smul.u32 2, %s22
        %s158 = smul.u32 2, %s23
        %v159 = vld [vmem:[%s136] sm:$0xff]
        %v160 = vld [vmem:[%s136 + $0x8] sm:$0xff]
        %v161 = vld [vmem:[%s136 + $0x10] sm:$0xff]
        %v162 = vld [vmem:[%s136 + $0x18] sm:$0xff]
        %vm163 = vcmask 130048
        %164 = vst.msk [vmem:[%s154] sm:$0xff] %vm163, %v159
        %165 = vst.msk [vmem:[%s154 + $0x8] sm:$0xff] %vm163, %v160
        %166 = vst.msk [vmem:[%s154 + $0x10] sm:$0xff] %vm163, %v161
        %167 = vst.msk [vmem:[%s154 + $0x18] sm:$0xff] %vm163, %v162
        %s168 = sand.u32 %s68, 1
        %s169 = scalar_lea.sflag [#allocation4], %s168
        %s170 = sand.u32 %s68, 1
        %s171 = smul.addr %s170, 32
        %s172 = scalar_lea.vmem [#allocation5], %s171
        // Predicated region
        $region29: #{tpu_custom_call.1} parent=23 // pred_check
          %p173 = pneg %p78
        $region30: #{tpu_custom_call.1} parent=23 // pred_check_branch
          %175 = sbr.rel (%p173) target = $region32
        $region31: #{tpu_custom_call.1} parent=23 // pred_region
          %s176 = smul.u32 2, %s22
          %s177 = smul.u32 2, %s23
          %s179 = ssub.s32 512, 512
          %180 = vsyncadd %s169, %s179
          %s181 = smul.addr %s176, 2
          %s182 = sadd.s32 %s177, %s181
          %s183 = smul.addr %s182, 128
          %s184 = scalar_lea.hbm %s1, %s183
          %s185 = sshll.u32 %s172, 4
          %s186 = int_to_ptr.vmem [resolvable:$true] %s185
          %191 = dma.vmem_to_hbm [thread:$0]  %s186, 512, %s184, %s169, 128, 128, 8
        $region32: #{tpu_custom_call.1} parent=23 // pred_fallthru
          _
      $region24: #{tpu_custom_call.1} parent=5 // pred_fallthru
        _
      %p192 = scmp.le.s32.totalorder 2, %s13
      // Predicated region
      $region33: #{tpu_custom_call.1} parent=5 // pred_check
        %p193 = pneg %p192
      $region34: #{tpu_custom_call.1} parent=5 // pred_check_branch
        %195 = sbr.rel (%p193) target = $region36
      $region35: #{tpu_custom_call.1} parent=5 // pred_region
        %s196 = ssub.s32 %s13, 2
        // Predicated region
        $region37: #{tpu_custom_call.1} parent=35 // pred_check
          %p197 = pneg %p84
        $region38: #{tpu_custom_call.1} parent=35 // pred_check_branch
          %199 = sbr.rel (%p197) target = $region40
        $region39: #{tpu_custom_call.1} parent=35 // pred_region
          %s200 = sand.u32 %s69, 1
          %s201 = scalar_lea.sflag [#allocation4], %s200
          %s202 = sand.u32 %s69, 1
          %s203 = smul.addr %s202, 32
          %s204 = scalar_lea.vmem [#allocation5], %s203
          %205 = dma.done %s201, 512
        $region40: #{tpu_custom_call.1} parent=35 // pred_fallthru
          _
      $region36: #{tpu_custom_call.1} parent=5 // pred_fallthru
        _
    $region6: #{tpu_custom_call.1} parent=1 // loop_footer
      %s17 = sadd.s32 1, %s13
    $region7: #{tpu_custom_call.1} parent=1 // loop_footer_branch
      %12 = sbr.rel target = $region3
    $region8: #{tpu_custom_call.1} parent=1 // loop_exit
      _
    %206 = vsyncpa [#allocation3], 1
    %s207 = scalar_lea.sflag [#allocation3], 1
    %208 = vsyncpa %s207, 1
    %209 = vsyncpa [#allocation4], 1
    %s210 = scalar_lea.sflag [#allocation4], 1
    %211 = vsyncpa %s210, 1

</llo_original>
